<compile_context>
chip_gen: v7x
topology: tpu7x:2x2x1
jax: 0.10.0
libtpu: 0.0.40
codegen_flags: <defaults>
</compile_context>

<pallas_src>
import functools

import jax
import jax.numpy as jnp
from jax.experimental import pallas as pl
from jax.experimental.pallas import tpu as pltpu

_LANE = 128
_SUBLANE = 8


def _round_up(x, m):
    return ((x + m - 1) // m) * m


def _cdiv(a, b):
    return -(-a // b)


@functools.lru_cache(maxsize=None)
def _hw_budgets():
    """Generation-aware VMEM budgets.

    Returns (vmem_limit, target_block, block_budget):
      vmem_limit   -> CompilerParams(vmem_limit_bytes=...), capped at ~55% of
                      physical VMEM (v7x: 64 MiB/TC -> ~35 MiB limit).
      target_block -> preferred per-stream block size (2 MiB on small-VMEM
                      chips, 6 MiB otherwise).
      block_budget -> budget used when sizing padded, double-buffered blocks,
                      leaving headroom for compiler-internal scratch.
    """
    cap = 128 * 1024 * 1024
    try:
        info = pltpu.get_tpu_info()
        cap = int(getattr(info, "vmem_capacity_bytes", cap)) or cap
    except Exception:
        pass
    vmem_limit = int(min(0.55 * cap, 64 * 1024 * 1024))
    target_block = (2 * 1024 * 1024) if cap <= 64 * 1024 * 1024 else (6 * 1024 * 1024)
    block_budget = int(0.6 * vmem_limit)
    return vmem_limit, target_block, block_budget


def _lane_tile(C, rows_pad, target_block):
    """Lane-axis tile: full C unless C is a large multiple of 128."""
    if C <= _LANE or C % _LANE != 0:
        return C
    tl = (target_block // (rows_pad * 4)) // _LANE * _LANE
    return int(max(_LANE, min(C, tl)))


def _plan_norm_fused(B, T, C, target_block, block_budget):
    """Tiles (tb, tl) for the single-sweep norm kernel, or None if the padded,
    double-buffered f32 footprint cannot fit the VMEM budget (-> two-pass)."""
    T_pad = _round_up(T, _SUBLANE)
    tl = _lane_tile(C, T_pad, target_block)
    tl_pad = _round_up(tl, _LANE)
    # x (2 bufs) + y (2 bufs) + ~2 blocks of f32 temps + stats (2 bufs), padded.
    per_b = (6 * T_pad + 2 * _SUBLANE) * tl_pad * 4
    if per_b > block_budget:
        return None
    tb_fit = block_budget // per_b
    tb_target = max(1, target_block // (T_pad * tl_pad * 4))
    tb = max(1, min(B, tb_fit, tb_target))
    if B >= 2:
        tb = max(1, min(tb, _cdiv(B, 4)))   # keep >= 2 (ideally >= 4) batch steps
    return tb, tl


def _plan_elementwise(B, T, C, target_block, block_budget):
    """Tiles (tb, tt, tl) for elementwise kernels (denorm / norm-apply) and the
    T-tiled stats reduction."""
    rows_nominal = _round_up(min(T, 512), _SUBLANE)
    tl = _lane_tile(C, rows_nominal, target_block)
    tl_pad = _round_up(tl, _LANE)
    per_row = 6 * tl_pad * 4                      # x(2) + y(2) + ~2 f32 temps
    rows_fit = block_budget // per_row
    if rows_fit >= T:
        tt = T
    else:
        tt = max(_SUBLANE, (rows_fit // _SUBLANE) * _SUBLANE)
    tt_pad = _round_up(tt, _SUBLANE)
    per_b = per_row * tt_pad + 2 * _SUBLANE * tl_pad * 4    # + stats block (2 bufs)
    tb_fit = max(1, block_budget // per_b)
    tb_target = max(1, target_block // (tt_pad * tl_pad * 4))
    tb = max(1, min(B, tb_fit, tb_target))
    if B >= 2:
        tb = max(1, min(tb, _cdiv(B, 4)))
    return tb, tt, tl


# --------------------------------------------------------------------------
# Kernels
# --------------------------------------------------------------------------
def _revin_norm_fused_kernel(x_ref, w_ref, b_ref, y_ref, stats_ref, *,
                             eps, affine, subtract_last):
    # x_ref/y_ref: (tb, T, tl); w_ref/b_ref: (1, 1, tl) f32
    # stats_ref: (tb, 2, tl) f32 -- row 0: center (mean or last), row 1: stdev
    x = x_ref[...].astype(jnp.float32)
    mean = jnp.mean(x, axis=1, keepdims=True)                        # (tb,1,tl)
    var = jnp.mean(jnp.square(x - mean), axis=1, keepdims=True)      # biased
    std = jnp.sqrt(var + eps)
    inv_std = 1.0 / std                                              # O(tb*tl)
    center = x[:, -1:, :] if subtract_last else mean
    if affine:
        scale = w_ref[...] * inv_std                                 # (tb,1,tl)
        shift = b_ref[...] - center * scale
    else:
        scale = inv_std
        shift = -center * scale
    y_ref[...] = (x * scale + shift).astype(y_ref.dtype)             # fused FMA
    stats_ref[:, 0:1, :] = center
    stats_ref[:, 1:2, :] = std


def _revin_stats_kernel(x_ref, stats_ref, s1_ref, s2_ref, shift_ref, *,
                        eps, subtract_last, seq_len, tt, needs_mask, last_local):
    # Long-T path, pass 1: accumulate shifted sum / sum-of-squares over T tiles.
    # Grid (B tiles, C tiles, T tiles); T is the reduction axis (last, 'arbitrary').
    ti = pl.program_id(2)
    x = x_ref[...].astype(jnp.float32)                               # (tb,tt,tl)

    @pl.when(ti == 0)
    def _():
        shift_ref[...] = x[:, 0:1, :]         # shifted-data trick for stability
        s1_ref[...] = jnp.zeros_like(s1_ref)
        s2_ref[...] = jnp.zeros_like(s2_ref)

    d = x - shift_ref[...]
    if needs_mask:                            # mask the padded tail of the last tile
        t_idx = ti * tt + jax.lax.broadcasted_iota(jnp.int32, x.shape, 1)
        d = jnp.where(t_idx < seq_len, d, 0.0)
    s1_ref[...] += jnp.sum(d, axis=1, keepdims=True)
    s2_ref[...] += jnp.sum(d * d, axis=1, keepdims=True)

    @pl.when(ti == pl.num_programs(2) - 1)
    def _():
        inv_n = 1.0 / seq_len
        m = s1_ref[...] * inv_n
        var = jnp.maximum(s2_ref[...] * inv_n - m * m, 0.0)
        std = jnp.sqrt(var + eps)
        if subtract_last:
            center = x[:, last_local:last_local + 1, :]   # global index T-1
        else:
            center = shift_ref[...] + m
        stats_ref[:, 0:1, :] = center
        stats_ref[:, 1:2, :] = std


def _revin_norm_apply_kernel(x_ref, stats_ref, w_ref, b_ref, y_ref, *, affine):
    # Long-T path, pass 2: pure elementwise FMA, tiled over (B, T, C).
    x = x_ref[...].astype(jnp.float32)
    center = stats_ref[:, 0:1, :]
    inv_std = 1.0 / stats_ref[:, 1:2, :]
    if affine:
        scale = w_ref[...] * inv_std
        shift = b_ref[...] - center * scale
    else:
        scale = inv_std
        shift = -center * scale
    y_ref[...] = (x * scale + shift).astype(y_ref.dtype)


def _revin_denorm_kernel(x_ref, stats_ref, w_ref, b_ref, y_ref, *, eps, affine):
    x = x_ref[...].astype(jnp.float32)
    center = stats_ref[:, 0:1, :]
    std = stats_ref[:, 1:2, :]
    if affine:
        scale = std / (w_ref[...] + eps * eps)            # O(tb*tl) divide only
        shift = center - b_ref[...] * scale
    else:
        scale = std
        shift = center
    y_ref[...] = (x * scale + shift).astype(y_ref.dtype)


# --------------------------------------------------------------------------
# pallas_call builders
# --------------------------------------------------------------------------
def _norm_fused_call(x, w3, b3, *, eps, affine, subtract_last, tb, tl, vmem_limit):
    B, T, C = x.shape
    grid = (pl.cdiv(B, tb), pl.cdiv(C, tl))
    kernel = functools.partial(_revin_norm_fused_kernel, eps=eps, affine=affine,
                               subtract_last=subtract_last)
    return pl.pallas_call(
        kernel,
        out_shape=(
            jax.ShapeDtypeStruct((B, T, C), x.dtype),
            jax.ShapeDtypeStruct((B, 2, C), jnp.float32),
        ),
        grid_spec=pltpu.PrefetchScalarGridSpec(
            num_scalar_prefetch=0,
            grid=grid,
            in_specs=[
                pl.BlockSpec((tb, T, tl), lambda bi, ci: (bi, 0, ci)),
                pl.BlockSpec((1, 1, tl), lambda bi, ci: (0, 0, ci)),
                pl.BlockSpec((1, 1, tl), lambda bi, ci: (0, 0, ci)),
            ],
            out_specs=[
                pl.BlockSpec((tb, T, tl), lambda bi, ci: (bi, 0, ci)),
                pl.BlockSpec((tb, 2, tl), lambda bi, ci: (bi, 0, ci)),
            ],
        ),
        compiler_params=pltpu.CompilerParams(
            dimension_semantics=("parallel", "parallel"),
            vmem_limit_bytes=vmem_limit,
        ),
    )(x, w3, b3)


def _stats_call(x, *, eps, subtract_last, tb, tt, tl, vmem_limit):
    B, T, C = x.shape
    nt = pl.cdiv(T, tt)
    last_tile = (T - 1) // tt
    last_local = (T - 1) - last_tile * tt
    kernel = functools.partial(
        _revin_stats_kernel, eps=eps, subtract_last=subtract_last, seq_len=T,
        tt=tt, needs_mask=(T % tt) != 0, last_local=last_local)
    return pl.pallas_call(
        kernel,
        out_shape=jax.ShapeDtypeStruct((B, 2, C), jnp.float32),
        grid_spec=pltpu.PrefetchScalarGridSpec(
            num_scalar_prefetch=0,
            grid=(pl.cdiv(B, tb), pl.cdiv(C, tl), nt),
            in_specs=[pl.BlockSpec((tb, tt, tl), lambda bi, ci, ti: (bi, ti, ci))],
            out_specs=pl.BlockSpec((tb, 2, tl), lambda bi, ci, ti: (bi, 0, ci)),
            scratch_shapes=[pltpu.VMEM((tb, 1, tl), jnp.float32)] * 3,
        ),
        compiler_params=pltpu.CompilerParams(
            dimension_semantics=("parallel", "parallel", "arbitrary"),
            vmem_limit_bytes=vmem_limit,
        ),
    )(x)


def _elementwise_call(kernel, x, stats, w3, b3, *, tb, tt, tl, vmem_limit):
    B, T, C = x.shape
    grid = (pl.cdiv(B, tb), pl.cdiv(T, tt), pl.cdiv(C, tl))
    return pl.pallas_call(
        kernel,
        out_shape=jax.ShapeDtypeStruct((B, T, C), x.dtype),
        grid_spec=pltpu.PrefetchScalarGridSpec(
            num_scalar_prefetch=0,
            grid=grid,
            in_specs=[
                pl.BlockSpec((tb, tt, tl), lambda bi, ti, ci: (bi, ti, ci)),
                pl.BlockSpec((tb, 2, tl), lambda bi, ti, ci: (bi, 0, ci)),
                pl.BlockSpec((1, 1, tl), lambda bi, ti, ci: (0, 0, ci)),
                pl.BlockSpec((1, 1, tl), lambda bi, ti, ci: (0, 0, ci)),
            ],
            out_specs=pl.BlockSpec((tb, tt, tl), lambda bi, ti, ci: (bi, ti, ci)),
        ),
        compiler_params=pltpu.CompilerParams(
            dimension_semantics=("parallel", "parallel", "parallel"),
            vmem_limit_bytes=vmem_limit,
        ),
    )(x, stats, w3, b3)


def _norm_apply_call(x, stats, w3, b3, *, affine, tb, tt, tl, vmem_limit):
    kernel = functools.partial(_revin_norm_apply_kernel, affine=affine)
    return _elementwise_call(kernel, x, stats, w3, b3, tb=tb, tt=tt, tl=tl,
                             vmem_limit=vmem_limit)


def _denorm_call(x, stats, w3, b3, *, eps, affine, tb, tt, tl, vmem_limit):
    kernel = functools.partial(_revin_denorm_kernel, eps=eps, affine=affine)
    return _elementwise_call(kernel, x, stats, w3, b3, tb=tb, tt=tt, tl=tl,
                             vmem_limit=vmem_limit)


# --------------------------------------------------------------------------
# Public wrappers (no layout transposes; stats stay packed (B, 2, C))
# --------------------------------------------------------------------------
def revin_norm(x, weight, bias, *, eps=1e-5, affine=True, subtract_last=False,
               force_two_pass=False):
    """x: (B, T, C); weight/bias: (C,).  Returns (y, stats) where stats is a
    packed (B, 2, C) f32 array: row 0 = center (mean, or x[:, -1, :] when
    subtract_last=True), row 1 = stdev."""
    B, T, C = x.shape
    w3 = jnp.asarray(weight, jnp.float32).reshape(1, 1, C)
    b3 = jnp.asarray(bias, jnp.float32).reshape(1, 1, C)
    vmem_limit, target_block, block_budget = _hw_budgets()
    plan = None if force_two_pass else _plan_norm_fused(B, T, C, target_block,
                                                        block_budget)
    if plan is not None:
        tb, tl = plan
        y, stats = _norm_fused_call(x, w3, b3, eps=eps, affine=affine,
                                    subtract_last=subtract_last,
                                    tb=tb, tl=tl, vmem_limit=vmem_limit)
    else:
        tb, tt, tl = _plan_elementwise(B, T, C, target_block, block_budget)
        stats = _stats_call(x, eps=eps, subtract_last=subtract_last,
                            tb=tb, tt=tt, tl=tl, vmem_limit=vmem_limit)
        y = _norm_apply_call(x, stats, w3, b3, affine=affine,
                             tb=tb, tt=tt, tl=tl, vmem_limit=vmem_limit)
    return y, stats


def revin_denorm(x, stats, weight, bias, *, eps=1e-5, affine=True):
    """x: (B, T, C); stats: packed (B, 2, C) from revin_norm; weight/bias: (C,)."""
    B, T, C = x.shape
    w3 = jnp.asarray(weight, jnp.float32).reshape(1, 1, C)
    b3 = jnp.asarray(bias, jnp.float32).reshape(1, 1, C)
    vmem_limit, target_block, block_budget = _hw_budgets()
    tb, tt, tl = _plan_elementwise(B, T, C, target_block, block_budget)
    return _denorm_call(x, stats.astype(jnp.float32), w3, b3, eps=eps,
                        affine=affine, tb=tb, tt=tt, tl=tl,
                        vmem_limit=vmem_limit)


class RevIN:
    """JAX/Pallas port of the PyTorch RevIN module (forward only)."""

    def __init__(self, num_features: int, eps=1e-5, affine=True,
                 subtract_last=False):
        self.num_features = num_features
        self.eps = eps
        self.affine = affine
        self.subtract_last = subtract_last
        # torch init: ones/zeros. When affine=False these are unused dummies
        # (the kernels statically skip the affine math).
        self.affine_weight = jnp.ones((num_features,), jnp.float32)
        self.affine_bias = jnp.zeros((num_features,), jnp.float32)
        self.stats = None          # packed (B, 2, C): row 0 center, row 1 stdev
        self.mean = None
        self.last = None
        self.stdev = None

    def __call__(self, x, mode: str):
        if mode == "norm":
            y, stats = revin_norm(
                x, self.affine_weight, self.affine_bias, eps=self.eps,
                affine=self.affine, subtract_last=self.subtract_last)
            self.stats = stats                      # used directly by denorm
            self.stdev = stats[:, 1:2, :]           # convenience views only
            if self.subtract_last:
                self.last = stats[:, 0:1, :]
            else:
                self.mean = stats[:, 0:1, :]
            return y
        elif mode == "denorm":
            return revin_denorm(x, self.stats, self.affine_weight,
                                self.affine_bias, eps=self.eps,
                                affine=self.affine)
        else:
            raise NotImplementedError


# --------------------------------------------------------------------------
# Self-test
# --------------------------------------------------------------------------
if __name__ == "__main__":
    def _close(a, b, atol=1e-4, rtol=1e-4):
        return bool(jnp.allclose(a, b, atol=atol, rtol=rtol))

    def ref_norm(x, w, b, eps, affine, subtract_last):
        mean = jnp.mean(x, axis=1, keepdims=True)
        var = jnp.mean((x - mean) ** 2, axis=1, keepdims=True)
        std = jnp.sqrt(var + eps)
        center = x[:, -1:, :] if subtract_last else mean
        y = (x - center) / std
        if affine:
            y = y * w + b
        return y, center, std

    key = jax.random.PRNGKey(0)

    # --- Test 1: fused path, affine, subtract_last=False --------------------
    B, T, C = 2, 8, 4
    x = jax.random.normal(key, (B, T, C), jnp.float32) * 3.0 + 1.5
    layer = RevIN(C)
    y = jax.block_until_ready(layer(x, "norm"))
    y_ref, c_ref, s_ref = ref_norm(x, layer.affine_weight, layer.affine_bias,
                                   layer.eps, True, False)
    assert _close(y, y_ref), "norm mismatch"
    assert _close(layer.mean, c_ref, atol=1e-5), "mean mismatch"
    assert _close(layer.stdev, s_ref, atol=1e-5), "stdev mismatch"
    x_rec = jax.block_until_ready(layer(y, "denorm"))
    assert _close(x_rec, x, atol=1e-3, rtol=1e-3), "denorm mismatch"

    # --- Test 2: lane-dense path (C = 128) -----------------------------------
    B2, T2, C2 = 2, 16, 128
    x2 = jax.random.normal(jax.random.PRNGKey(2), (B2, T2, C2),
                           jnp.float32) * 2.0 - 0.5
    layer2 = RevIN(C2)
    y2 = jax.block_until_ready(layer2(x2, "norm"))
    y2_ref, _, _ = ref_norm(x2, layer2.affine_weight, layer2.affine_bias,
                            layer2.eps, True, False)
    assert _close(y2, y2_ref), "norm mismatch (C=128)"
    x2_rec = jax.block_until_ready(layer2(y2, "denorm"))
    assert _close(x2_rec, x2, atol=1e-3, rtol=1e-3), "denorm mismatch (C=128)"

    # --- Test 3: subtract_last=True ------------------------------------------
    layer3 = RevIN(C, subtract_last=True)
    y3 = jax.block_until_ready(layer3(x, "norm"))
    y3_ref, _, _ = ref_norm(x, layer3.affine_weight, layer3.affine_bias,
                            layer3.eps, True, True)
    assert _close(y3, y3_ref), "subtract_last norm mismatch"
    x3_rec = jax.block_until_ready(layer3(y3, "denorm"))
    assert _close(x3_rec, x, atol=1e-3, rtol=1e-3), "subtract_last denorm mismatch"

    # --- Test 4: affine=False -------------------------------------------------
    layer4 = RevIN(C, affine=False)
    y4 = jax.block_until_ready(layer4(x, "norm"))
    y4_ref, _, _ = ref_norm(x, None, None, layer4.eps, False, False)
    assert _close(y4, y4_ref), "affine=False norm mismatch"
    x4_rec = jax.block_until_ready(layer4(y4, "denorm"))
    assert _close(x4_rec, x, atol=1e-3, rtol=1e-3), "affine=False denorm mismatch"

    # --- Test 5: public two-pass (long-T) path, forced ------------------------
    y_tp, stats_tp = revin_norm(x, layer.affine_weight, layer.affine_bias,
                                eps=1e-5, affine=True, subtract_last=False,
                                force_two_pass=True)
    jax.block_until_ready(y_tp)
    assert _close(y_tp, y_ref), "two-pass norm mismatch"
    assert _close(stats_tp[:, 0:1, :], c_ref, atol=1e-5), "two-pass mean mismatch"
    assert _close(stats_tp[:, 1:2, :], s_ref, atol=1e-5), "two-pass stdev mismatch"

    # --- Test 6: T-tiled reduction with masked tail (T % tt != 0) -------------
    vmem_limit, _, _ = _hw_budgets()
    B5, T5, C5 = 2, 20, 4
    x5 = jax.random.normal(jax.random.PRNGKey(3), (B5, T5, C5),
                           jnp.float32) * 2.0 - 0.7
    w5 = jnp.ones((1, 1, C5), jnp.float32)
    b5 = jnp.zeros((1, 1, C5), jnp.float32)
    for sub_last in (False, True):
        stats5 = _stats_call(x5, eps=1e-5, subtract_last=sub_last,
                             tb=1, tt=8, tl=C5, vmem_limit=vmem_limit)
        y5 = _norm_apply_call(x5, stats5, w5, b5, affine=True,
                              tb=1, tt=8, tl=C5, vmem_limit=vmem_limit)
        jax.block_until_ready(y5)
        y5_ref, c5_ref, s5_ref = ref_norm(x5, 1.0, 0.0, 1e-5, True, sub_last)
        assert _close(stats5[:, 0:1, :], c5_ref, atol=1e-5), "tiled center mismatch"
        assert _close(stats5[:, 1:2, :], s5_ref, atol=1e-5), "tiled stdev mismatch"
        assert _close(y5, y5_ref), "tiled norm mismatch"
        x5_rec = _denorm_call(y5, stats5, w5, b5, eps=1e-5, affine=True,
                              tb=1, tt=8, tl=C5, vmem_limit=vmem_limit)
        jax.block_until_ready(x5_rec)
        assert _close(x5_rec, x5, atol=1e-3, rtol=1e-3), "tiled denorm mismatch"

    print("KERNEL_OK")
</pallas_src>

<mosaic_0001>
module attributes {stable_mosaic.version = 11 : i64} {
  func.func @_revin_norm_fused_kernel(%arg0: i32, %arg1: i32, %arg2: memref<1x8x4xf32, #tpu.memory_space<vmem>>, %arg3: memref<1x1x4xf32, #tpu.memory_space<vmem>>, %arg4: memref<1x1x4xf32, #tpu.memory_space<vmem>>, %arg5: memref<1x8x4xf32, #tpu.memory_space<vmem>>, %arg6: memref<1x2x4xf32, #tpu.memory_space<vmem>>) attributes {dimension_semantics = [#tpu.dimension_semantics<parallel>, #tpu.dimension_semantics<parallel>], iteration_bounds = array<i64: 2, 1>, scalar_prefetch = 0 : i64, scratch_operands = 0 : i64, tpu.core_type = #tpu.core_type<tc>, window_params = [{transform_indices = @transform_0, window_bounds = array<i64: 1, 8, 4>}, {transform_indices = @transform_1, window_bounds = array<i64: 1, 1, 4>}, {transform_indices = @transform_2, window_bounds = array<i64: 1, 1, 4>}, {transform_indices = @transform_3, window_bounds = array<i64: 1, 8, 4>}, {transform_indices = @transform_4, window_bounds = array<i64: 1, 2, 4>}]} {
    %c0 = arith.constant 0 : index
    %c0_0 = arith.constant 0 : index
    %c0_1 = arith.constant 0 : index
    %0 = vector.load %arg2[%c0, %c0_0, %c0_1] : memref<1x8x4xf32, #tpu.memory_space<vmem>>, vector<1x8x4xf32>
    %cst = arith.constant dense<0.000000e+00> : vector<1x4xf32>
    %1 = vector.multi_reduction <add>, %0, %cst [1] : vector<1x8x4xf32> to vector<1x4xf32>
    %2 = vector.shape_cast %1 : vector<1x4xf32> to vector<1x1x4xf32>
    %cst_2 = arith.constant 8.000000e+00 : f32
    %3 = vector.broadcast %cst_2 : f32 to vector<1x1x4xf32>
    %4 = arith.divf %2, %3 : vector<1x1x4xf32>
    %5 = vector.broadcast %4 : vector<1x1x4xf32> to vector<1x8x4xf32>
    %6 = arith.subf %0, %5 : vector<1x8x4xf32>
    %7 = arith.mulf %6, %6 : vector<1x8x4xf32>
    %cst_3 = arith.constant dense<0.000000e+00> : vector<1x4xf32>
    %8 = vector.multi_reduction <add>, %7, %cst_3 [1] : vector<1x8x4xf32> to vector<1x4xf32>
    %9 = vector.shape_cast %8 : vector<1x4xf32> to vector<1x1x4xf32>
    %cst_4 = arith.constant 8.000000e+00 : f32
    %10 = vector.broadcast %cst_4 : f32 to vector<1x1x4xf32>
    %11 = arith.divf %9, %10 : vector<1x1x4xf32>
    %cst_5 = arith.constant 9.99999974E-6 : f32
    %12 = vector.broadcast %cst_5 : f32 to vector<1x1x4xf32>
    %13 = arith.addf %11, %12 : vector<1x1x4xf32>
    %14 = math.sqrt %13 : vector<1x1x4xf32>
    %cst_6 = arith.constant 1.000000e+00 : f32
    %15 = vector.broadcast %cst_6 : f32 to vector<1x1x4xf32>
    %16 = arith.divf %15, %14 : vector<1x1x4xf32>
    %c0_7 = arith.constant 0 : index
    %c0_8 = arith.constant 0 : index
    %c0_9 = arith.constant 0 : index
    %17 = vector.load %arg3[%c0_7, %c0_8, %c0_9] : memref<1x1x4xf32, #tpu.memory_space<vmem>>, vector<1x1x4xf32>
    %18 = arith.mulf %17, %16 : vector<1x1x4xf32>
    %c0_10 = arith.constant 0 : index
    %c0_11 = arith.constant 0 : index
    %c0_12 = arith.constant 0 : index
    %19 = vector.load %arg4[%c0_10, %c0_11, %c0_12] : memref<1x1x4xf32, #tpu.memory_space<vmem>>, vector<1x1x4xf32>
    %20 = arith.mulf %4, %18 : vector<1x1x4xf32>
    %21 = arith.subf %19, %20 : vector<1x1x4xf32>
    %22 = vector.broadcast %18 : vector<1x1x4xf32> to vector<1x8x4xf32>
    %23 = arith.mulf %0, %22 : vector<1x8x4xf32>
    %24 = vector.broadcast %21 : vector<1x1x4xf32> to vector<1x8x4xf32>
    %25 = arith.addf %23, %24 : vector<1x8x4xf32>
    %c0_13 = arith.constant 0 : index
    %c0_14 = arith.constant 0 : index
    %c0_15 = arith.constant 0 : index
    %26 = vector.load %arg5[%c0_13, %c0_14, %c0_15] : memref<1x8x4xf32, #tpu.memory_space<vmem>>, vector<1x8x4xf32>
    tpu.vector_store %arg5[%c0_13, %c0_14, %c0_15], %25 {strides = array<i32>} : memref<1x8x4xf32, #tpu.memory_space<vmem>>, vector<1x8x4xf32>,
    %c0_16 = arith.constant 0 : index
    %c0_17 = arith.constant 0 : index
    %c0_18 = arith.constant 0 : index
    %27 = vector.load %arg6[%c0_16, %c0_17, %c0_18] : memref<1x2x4xf32, #tpu.memory_space<vmem>>, vector<1x1x4xf32>
    tpu.vector_store %arg6[%c0_16, %c0_17, %c0_18], %4 {strides = array<i32>} : memref<1x2x4xf32, #tpu.memory_space<vmem>>, vector<1x1x4xf32>,
    %c0_19 = arith.constant 0 : index
    %c1 = arith.constant 1 : index
    %c0_20 = arith.constant 0 : index
    %28 = vector.load %arg6[%c0_19, %c1, %c0_20] : memref<1x2x4xf32, #tpu.memory_space<vmem>>, vector<1x1x4xf32>
    tpu.vector_store %arg6[%c0_19, %c1, %c0_20], %14 {strides = array<i32>} : memref<1x2x4xf32, #tpu.memory_space<vmem>>, vector<1x1x4xf32>,
    return
  }
  func.func @transform_0(%arg0: i32, %arg1: i32) -> (i32, i32, i32) {
    %c0_i32 = arith.constant 0 : i32
    %c0_i32_0 = arith.constant 0 : i32
    return %arg0, %c0_i32, %arg1 : i32, i32, i32
  }
  func.func @transform_1(%arg0: i32, %arg1: i32) -> (i32, i32, i32) {
    %c0_i32 = arith.constant 0 : i32
    %c0_i32_0 = arith.constant 0 : i32
    %c0_i32_1 = arith.constant 0 : i32
    return %c0_i32, %c0_i32_0, %arg1 : i32, i32, i32
  }
  func.func @transform_2(%arg0: i32, %arg1: i32) -> (i32, i32, i32) {
    %c0_i32 = arith.constant 0 : i32
    %c0_i32_0 = arith.constant 0 : i32
    %c0_i32_1 = arith.constant 0 : i32
    return %c0_i32, %c0_i32_0, %arg1 : i32, i32, i32
  }
  func.func @transform_3(%arg0: i32, %arg1: i32) -> (i32, i32, i32) {
    %c0_i32 = arith.constant 0 : i32
    %c0_i32_0 = arith.constant 0 : i32
    return %arg0, %c0_i32, %arg1 : i32, i32, i32
  }
  func.func @transform_4(%arg0: i32, %arg1: i32) -> (i32, i32, i32) {
    %c0_i32 = arith.constant 0 : i32
    %c0_i32_0 = arith.constant 0 : i32
    return %arg0, %c0_i32, %arg1 : i32, i32, i32
  }
}

</mosaic_0001>

<llo_original>
// kernel: tpu_custom_call.1
$region0: #{tpu_custom_call.1}
  #allocation0 [shape = 'u32[]', space=smem, size = 0x4, offset = 0x4, fixed_abs, tag = 'smem constant byte address 0x4 - core index']
  #allocation1 [shape = 'u32[144,128]{1,0:T(1,128)}', space=vmem, size = 0x12000, scoped, tag = 'internal scratch']
  %s0 = inlined_call_operand.hbm [shape: f32[2,8,4], index: 0, kind: input, shape index: {}]
  %s1 = inlined_call_operand.hbm [shape: f32[1,1,4], index: 1, kind: input, shape index: {}]
  %s2 = inlined_call_operand.hbm [shape: f32[1,1,4], index: 2, kind: input, shape index: {}]
  %s3 = inlined_call_operand.hbm [shape: f32[2,8,4], index: 3, kind: output, shape index: {0}]
  %s4 = inlined_call_operand.hbm [shape: f32[2,2,4], index: 4, kind: output, shape index: {1}]
  %5 = xla_tuple %s3, %s4
  %s6 = sld [smem:[#allocation0]]
  $region65: #{tpu_custom_call.1} parent=0
    _
  %s8 = ssub.s32 1, %s6
  %s9 = scalar_select 0, %s8, %s6
  $region1: #{tpu_custom_call.1} parent=0
    #allocation2 [shape = 'u8[8192]{0}', space=vmem, size = 0x2000, scoped, tag = 'input window, operand 0']
    #allocation3 [shape = 's32[2]{0}', space=sflag, size = 0x8, scoped, tag = 'scoped memory for tpu_custom_call.1']
    #allocation4 [shape = 's32[2]{0}', space=sflag, size = 0x8, scoped, tag = 'scoped memory for tpu_custom_call.1']
    #allocation5 [shape = 'u8[512]{0}', space=vmem, size = 0x400, scoped, tag = 'input window, operand 1, single buffered']
    #allocation6 [shape = 's32[1]{0}', space=sflag, size = 0x4, scoped, tag = 'scoped memory for tpu_custom_call.1']
    #allocation7 [shape = 'u8[512]{0}', space=vmem, size = 0x400, scoped, tag = 'input window, operand 2, single buffered']
    #allocation8 [shape = 'u8[8192]{0}', space=vmem, size = 0x2000, scoped, tag = 'output window, operand 0']
    #allocation9 [shape = 'u8[2048]{0}', space=vmem, size = 0x800, scoped, tag = 'output window, operand 1']
    #allocation10 [shape = 's32[2]{0}', space=sflag, size = 0x8, scoped, tag = 'scoped memory for tpu_custom_call.1']
    %10 = vsyncpa [#allocation3], 0
    %s11 = scalar_lea.sflag [#allocation3], 1
    %12 = vsyncpa %s11, 0
    %13 = vsyncpa [#allocation6], 0
    %14 = vsyncpa [#allocation4], 0
    %s15 = scalar_lea.sflag [#allocation4], 1
    %16 = vsyncpa %s15, 0
    %17 = vsyncpa [#allocation10], 0
    %s18 = scalar_lea.sflag [#allocation10], 1
    %19 = vsyncpa %s18, 0
    loop: start=0, step=1, limit=4
    $region2: #{tpu_custom_call.1} parent=1 // loop_pre_header
      _
    $region3: #{tpu_custom_call.1} parent=1 // loop_header
      %s21 = sphi 0, %s25
      %p22 = scmp.ge.s32.totalorder %s21, 4
      %s28 = sphi 0, %s40
      %s29 = sphi 0, %s36
      %s30 = sphi 0, %s28
      %s31 = sphi 0, %s29
      %s32 = sphi 0, %s30
      %s33 = sphi 0, %s31
      %s45 = sphi 0, %s47
      %s48 = sphi 0, %s45
      %s49 = sphi 0, %s48
      %s65 = sphi 0, %s49
      %s71 = sphi 0, %s73
      %s74 = sphi 0, %s71
      %s75 = sphi 0, %s74
      %s91 = sphi 0, %s75
      %s97 = sphi 0, %s99
      %s100 = sphi 0, %s97
      %s101 = sphi 0, %s100
      %s117 = sphi 0, %s101
      %s125 = sphi 0, %s127
      %s128 = sphi 0, %s125
      %s129 = sphi 0, %s128
      %s145 = sphi 0, %s129
      %s153 = sphi 0, %s155
      %s156 = sphi 0, %s153
      %s157 = sphi 0, %s156
      %s173 = sphi 0, %s157
    $region4: #{tpu_custom_call.1} parent=1 // loop_header_branch
      %24 = sbr.rel (%p22) target = $region8
    $region5: #{tpu_custom_call.1} parent=1 // loop_body
      %s26 = ssub.s32 %s21, 1
      %s27 = ssub.s32 %s21, 2
      %s34 = sadd.s32 1, %s29
      %p35 = scmp.ge.s32.totalorder %s34, 1
      %s36 = scalar_select %p35, 0, %s34
      %s37 = sadd.s32 1, %s28
      %s38 = scalar_select %p35, %s37, %s28
      %p39 = scmp.ge.s32.totalorder %s38, 2
      %s40 = scalar_select %p39, 0, %s38
      %s41 = ssub.s32 %s28, %s40
      %s42 = ssub.s32 %s29, %s36
      %s43 = sor.u32 %s41, %s42
      %p44 = scmp.eq.s32.totalorder %s43, 0
      %s46 = sadd.s32 %s45, 1
      %s47 = scalar_select %p44, %s45, %s46
      %p50 = pneg %p44
      %p51 = scmp.eq.s32.totalorder %s21, 1
      %p52 = por %p50, %p51
      %p53 = scmp.ne.s32.totalorder %s45, %s48
      %p54 = scmp.eq.s32.totalorder %s21, 0
      %p55 = por %p53, %p54
      %p56 = scmp.ne.s32.totalorder %s45, %s48
      %p57 = scmp.eq.s32.totalorder %s26, 1
      %p58 = por %p56, %p57
      %p59 = scmp.ne.s32.totalorder %s48, %s49
      %p60 = scmp.eq.s32.totalorder %s26, 0
      %p61 = por %p59, %p60
      %p62 = scmp.ne.s32.totalorder %s48, %s49
      %p63 = scmp.eq.s32.totalorder %s27, 1
      %p64 = por %p62, %p63
      %p66 = scmp.ne.s32.totalorder %s49, %s65
      %p67 = scmp.eq.s32.totalorder %s27, 0
      %p68 = por %p66, %p67
      %s69 = ssub.s32 %s29, %s36
      %p70 = scmp.eq.s32.totalorder %s69, 0
      %s72 = sadd.s32 %s71, 1
      %s73 = scalar_select %p70, %s71, %s72
      %p76 = pneg %p70
      %p77 = scmp.eq.s32.totalorder %s21, 1
      %p78 = por %p76, %p77
      %p79 = scmp.ne.s32.totalorder %s71, %s74
      %p80 = scmp.eq.s32.totalorder %s21, 0
      %p81 = por %p79, %p80
      %p82 = scmp.ne.s32.totalorder %s71, %s74
      %p83 = scmp.eq.s32.totalorder %s26, 1
      %p84 = por %p82, %p83
      %p85 = scmp.ne.s32.totalorder %s74, %s75
      %p86 = scmp.eq.s32.totalorder %s26, 0
      %p87 = por %p85, %p86
      %p88 = scmp.ne.s32.totalorder %s74, %s75
      %p89 = scmp.eq.s32.totalorder %s27, 1
      %p90 = por %p88, %p89
      %p92 = scmp.ne.s32.totalorder %s75, %s91
      %p93 = scmp.eq.s32.totalorder %s27, 0
      %p94 = por %p92, %p93
      %s95 = ssub.s32 %s29, %s36
      %p96 = scmp.eq.s32.totalorder %s95, 0
      %s98 = sadd.s32 %s97, 1
      %s99 = scalar_select %p96, %s97, %s98
      %p102 = pneg %p96
      %p103 = scmp.eq.s32.totalorder %s21, 1
      %p104 = por %p102, %p103
      %p105 = scmp.ne.s32.totalorder %s97, %s100
      %p106 = scmp.eq.s32.totalorder %s21, 0
      %p107 = por %p105, %p106
      %p108 = scmp.ne.s32.totalorder %s97, %s100
      %p109 = scmp.eq.s32.totalorder %s26, 1
      %p110 = por %p108, %p109
      %p111 = scmp.ne.s32.totalorder %s100, %s101
      %p112 = scmp.eq.s32.totalorder %s26, 0
      %p113 = por %p111, %p112
      %p114 = scmp.ne.s32.totalorder %s100, %s101
      %p115 = scmp.eq.s32.totalorder %s27, 1
      %p116 = por %p114, %p115
      %p118 = scmp.ne.s32.totalorder %s101, %s117
      %p119 = scmp.eq.s32.totalorder %s27, 0
      %p120 = por %p118, %p119
      %s121 = ssub.s32 %s28, %s40
      %s122 = ssub.s32 %s29, %s36
      %s123 = sor.u32 %s121, %s122
      %p124 = scmp.eq.s32.totalorder %s123, 0
      %s126 = sadd.s32 %s125, 1
      %s127 = scalar_select %p124, %s125, %s126
      %p130 = pneg %p124
      %p131 = scmp.eq.s32.totalorder %s21, 1
      %p132 = por %p130, %p131
      %p133 = scmp.ne.s32.totalorder %s125, %s128
      %p134 = scmp.eq.s32.totalorder %s21, 0
      %p135 = por %p133, %p134
      %p136 = scmp.ne.s32.totalorder %s125, %s128
      %p137 = scmp.eq.s32.totalorder %s26, 1
      %p138 = por %p136, %p137
      %p139 = scmp.ne.s32.totalorder %s128, %s129
      %p140 = scmp.eq.s32.totalorder %s26, 0
      %p141 = por %p139, %p140
      %p142 = scmp.ne.s32.totalorder %s128, %s129
      %p143 = scmp.eq.s32.totalorder %s27, 1
      %p144 = por %p142, %p143
      %p146 = scmp.ne.s32.totalorder %s129, %s145
      %p147 = scmp.eq.s32.totalorder %s27, 0
      %p148 = por %p146, %p147
      %s149 = ssub.s32 %s28, %s40
      %s150 = ssub.s32 %s29, %s36
      %s151 = sor.u32 %s149, %s150
      %p152 = scmp.eq.s32.totalorder %s151, 0
      %s154 = sadd.s32 %s153, 1
      %s155 = scalar_select %p152, %s153, %s154
      %p158 = pneg %p152
      %p159 = scmp.eq.s32.totalorder %s21, 1
      %p160 = por %p158, %p159
      %p161 = scmp.ne.s32.totalorder %s153, %s156
      %p162 = scmp.eq.s32.totalorder %s21, 0
      %p163 = por %p161, %p162
      %p164 = scmp.ne.s32.totalorder %s153, %s156
      %p165 = scmp.eq.s32.totalorder %s26, 1
      %p166 = por %p164, %p165
      %p167 = scmp.ne.s32.totalorder %s156, %s157
      %p168 = scmp.eq.s32.totalorder %s26, 0
      %p169 = por %p167, %p168
      %p170 = scmp.ne.s32.totalorder %s156, %s157
      %p171 = scmp.eq.s32.totalorder %s27, 1
      %p172 = por %p170, %p171
      %p174 = scmp.ne.s32.totalorder %s157, %s173
      %p175 = scmp.eq.s32.totalorder %s27, 0
      %p176 = por %p174, %p175
      %p177 = scmp.le.s32.totalorder 1, %s21
      %p178 = scmp.lt.s32.totalorder %s21, 3
      %p179 = pnand %p177, %p178
      %p180 = pneg %p179
      // Predicated region
      $region9: #{tpu_custom_call.1} parent=5 // pred_check
        _
      $region10: #{tpu_custom_call.1} parent=5 // pred_check_branch
        %182 = sbr.rel (%p179) target = $region12
      $region11: #{tpu_custom_call.1} parent=5 // pred_region
        %s183 = ssub.s32 %s21, 1
        // Predicated region
        $region13: #{tpu_custom_call.1} parent=11 // pred_check
          %p184 = pneg %p87
        $region14: #{tpu_custom_call.1} parent=11 // pred_check_branch
          %186 = sbr.rel (%p184) target = $region16
        $region15: #{tpu_custom_call.1} parent=11 // pred_region
          %s188 = ssub.s32 16, 16
          %189 = vsyncadd [#allocation6], %s188
          %s190 = smul.addr %s31, 16
          %s191 = scalar_lea.hbm %s1, %s190
          %s193 = sshll.u32 [#allocation5], 4
          %s194 = int_to_ptr.vmem [resolvable:$true] %s193
          %196 = dma.hbm_to_vmem [thread:$0]  %s191, 16, %s194, [#allocation6]
        $region16: #{tpu_custom_call.1} parent=11 // pred_fallthru
          _
        // Predicated region
        $region17: #{tpu_custom_call.1} parent=11 // pred_check
          %p197 = pneg %p113
        $region18: #{tpu_custom_call.1} parent=11 // pred_check_branch
          %199 = sbr.rel (%p197) target = $region20
        $region19: #{tpu_custom_call.1} parent=11 // pred_region
          %s201 = ssub.s32 16, 16
          %202 = vsyncadd [#allocation6], %s201
          %s203 = smul.addr %s31, 16
          %s204 = scalar_lea.hbm %s2, %s203
          %s206 = sshll.u32 [#allocation7], 4
          %s207 = int_to_ptr.vmem [resolvable:$true] %s206
          %209 = dma.hbm_to_vmem [thread:$0]  %s204, 16, %s207, [#allocation6]
        $region20: #{tpu_custom_call.1} parent=11 // pred_fallthru
          _
      $region12: #{tpu_custom_call.1} parent=5 // pred_fallthru
        _
      %p210 = scmp.lt.s32.totalorder %s21, 2
      // Predicated region
      $region21: #{tpu_custom_call.1} parent=5 // pred_check
        %p211 = pneg %p210
      $region22: #{tpu_custom_call.1} parent=5 // pred_check_branch
        %213 = sbr.rel (%p211) target = $region24
      $region23: #{tpu_custom_call.1} parent=5 // pred_region
        // Predicated region
        $region25: #{tpu_custom_call.1} parent=23 // pred_check
          %p214 = pneg %p55
        $region26: #{tpu_custom_call.1} parent=23 // pred_check_branch
          %216 = sbr.rel (%p214) target = $region28
        $region27: #{tpu_custom_call.1} parent=23 // pred_region
          %s217 = sand.u32 %s45, 1
          %s218 = scalar_lea.sflag [#allocation3], %s217
          %s219 = sand.u32 %s45, 1
          %s220 = smul.addr %s219, 8
          %s221 = scalar_lea.vmem [#allocation2], %s220
          %s223 = ssub.s32 128, 128
          %224 = vsyncadd %s218, %s223
          %s225 = sadd.s32 %s29, %s28
          %s226 = smul.addr %s225, 128
          %s227 = scalar_lea.hbm %s0, %s226
          %s229 = sshll.u32 %s221, 4
          %s230 = int_to_ptr.vmem [resolvable:$true] %s229
          %232 = dma.hbm_to_vmem [thread:$0]  %s227, 128, %s230, %s218
        $region28: #{tpu_custom_call.1} parent=23 // pred_fallthru
          _
      $region24: #{tpu_custom_call.1} parent=5 // pred_fallthru
        _
      %p233 = scmp.le.s32.totalorder 1, %s21
      %p234 = scmp.lt.s32.totalorder %s21, 3
      %p235 = pnand %p233, %p234
      %p236 = pneg %p235
      // Predicated region
      $region29: #{tpu_custom_call.1} parent=5 // pred_check
        _
      $region30: #{tpu_custom_call.1} parent=5 // pred_check_branch
        %238 = sbr.rel (%p235) target = $region32
      $region31: #{tpu_custom_call.1} parent=5 // pred_region
        %s239 = ssub.s32 %s21, 1
        %s240 = sand.u32 %s48, 1
        %s241 = scalar_lea.sflag [#allocation3], %s240
        %s242 = sand.u32 %s48, 1
        %s243 = smul.addr %s242, 8
        %s244 = scalar_lea.vmem [#allocation2], %s243
        // Predicated region
        $region33: #{tpu_custom_call.1} parent=31 // pred_check
          %p245 = pneg %p61
        $region34: #{tpu_custom_call.1} parent=31 // pred_check_branch
          %247 = sbr.rel (%p245) target = $region36
        $region35: #{tpu_custom_call.1} parent=31 // pred_region
          %248 = dma.done %s241, 128
        $region36: #{tpu_custom_call.1} parent=31 // pred_fallthru
          _
        // Predicated region
        $region37: #{tpu_custom_call.1} parent=31 // pred_check
          %p249 = pneg %p87
        $region38: #{tpu_custom_call.1} parent=31 // pred_check_branch
          %251 = sbr.rel (%p249) target = $region40
        $region39: #{tpu_custom_call.1} parent=31 // pred_region
          %252 = dma.done [#allocation6], 16
        $region40: #{tpu_custom_call.1} parent=31 // pred_fallthru
          _
        // Predicated region
        $region41: #{tpu_custom_call.1} parent=31 // pred_check
          %p253 = pneg %p113
        $region42: #{tpu_custom_call.1} parent=31 // pred_check_branch
          %255 = sbr.rel (%p253) target = $region44
        $region43: #{tpu_custom_call.1} parent=31 // pred_region
          %256 = dma.done [#allocation6], 16
        $region44: #{tpu_custom_call.1} parent=31 // pred_fallthru
          _
        %s257 = sand.u32 %s48, 1
        %s258 = scalar_lea.sflag [#allocation3], %s257
        %s259 = sand.u32 %s48, 1
        %s260 = smul.addr %s259, 8
        %s261 = scalar_lea.vmem [#allocation2], %s260
        %p262 = pneg %p61
        %p263 = pneg %p58
        %p264 = pneg %p87
        %p265 = pneg %p84
        %p266 = pneg %p113
        %p267 = pneg %p110
        %p268 = pneg %p141
        %p269 = pneg %p138
        %s270 = sand.u32 %s128, 1
        %s271 = scalar_lea.sflag [#allocation4], %s270
        %s272 = sand.u32 %s128, 1
        %s273 = smul.addr %s272, 8
        %s274 = scalar_lea.vmem [#allocation8], %s273
        %p275 = pneg %p169
        %p276 = pneg %p166
        %s277 = sand.u32 %s156, 1
        %s278 = scalar_lea.sflag [#allocation10], %s277
        %s279 = sand.u32 %s156, 1
        %s280 = smul.addr %s279, 2
        %s281 = scalar_lea.vmem [#allocation9], %s280
        %v282 = vld [vmem:[%s244] sm:$0xff]
        %vm283 = vcmask 31744
        %v284 = vsel %vm283, %v282, 0.0
        %v285 = vrot.slane %v284, 4
        %v286 = vadd.f32 %v284, %v285
        %v287 = vrot.slane %v286, 2
        %v288 = vadd.f32 %v286, %v287
        %v289 = vrot.slane %v288, 1
        %v290 = vadd.f32 %v288, %v289
        %v291 = vrcp.pop 8.0
        %v292 = vmul.f32 %v290, %v291
        %v293 = vsub.f32 %v282, %v292
        %v294 = vmul.f32 %v293, %v293
        %v295 = vsel %vm283, %v294, 0.0
        %v296 = vrot.slane %v295, 4
        %v297 = vadd.f32 %v295, %v296
        %v298 = vrot.slane %v297, 2
        %v299 = vadd.f32 %v297, %v298
        %v300 = vrot.slane %v299, 1
        %v301 = vadd.f32 %v299, %v300
        %v302 = vmul.f32 %v301, %v291
        %v303 = vadd.f32 %v302, 1e-05
        %v304 = vrsqrt.pop %v303
        %v305 = vmul.f32 %v303, %v304
        %vm306 = vcmp.eq.f32.partialorder %v303, inf
        %v307 = vsel %vm306, %v303, %v305
        %vm308 = vcmp.eq.f32.partialorder %v303, 0.0
        %v309 = vand.u32 %v303, 2147483648
        %v310 = vsel %vm308, %v309, %v307
        %v311 = vrcp.pop %v310
        %v312 = vmul.f32 1.0, %v311
        %v313 = vld [vmem:[#allocation5] sm:$0x1]
        %v314 = vmul.f32 %v313, %v312
        %v315 = vld [vmem:[#allocation7] sm:$0x1]
        %v316 = vmul.f32 %v292, %v314
        %v317 = vsub.f32 %v315, %v316
        %v319 = vlaneseq
        %v320 = vshrl.u32 %v319, 7
        %v321 = vsub.s32 0, %v320
        %v322 = vrot.slane %v314, %v321
        %v324 = vmul.f32 %v282, %v322
        %v326 = vlaneseq
        %v327 = vshrl.u32 %v326, 7
        %v328 = vsub.s32 0, %v327
        %v329 = vrot.slane %v317, %v328
        %v331 = vadd.f32 %v324, %v329
        %332 = vst.msk [vmem:[%s274] sm:$0xff] %vm283, %v331
        %vm333 = vcmask 24576
        %334 = vst.msk [vmem:[%s281] sm:$0x1] %vm333, %v292
        %335 = vst.msk [vmem:[%s281 + $0x1] sm:$0x1] %vm333, %v310
        %s336 = sand.u32 %s128, 1
        %s337 = scalar_lea.sflag [#allocation4], %s336
        %s338 = sand.u32 %s128, 1
        %s339 = smul.addr %s338, 8
        %s340 = scalar_lea.vmem [#allocation8], %s339
        %s341 = sand.u32 %s156, 1
        %s342 = scalar_lea.sflag [#allocation10], %s341
        %s343 = sand.u32 %s156, 1
        %s344 = smul.addr %s343, 2
        %s345 = scalar_lea.vmem [#allocation9], %s344
        // Predicated region
        $region45: #{tpu_custom_call.1} parent=31 // pred_check
          %p346 = pneg %p138
        $region46: #{tpu_custom_call.1} parent=31 // pred_check_branch
          %348 = sbr.rel (%p346) target = $region48
        $region47: #{tpu_custom_call.1} parent=31 // pred_region
          %s350 = ssub.s32 128, 128
          %351 = vsyncadd %s337, %s350
          %s352 = sadd.s32 %s31, %s30
          %s353 = smul.addr %s352, 128
          %s354 = scalar_lea.hbm %s3, %s353
          %s356 = sshll.u32 %s340, 4
          %s357 = int_to_ptr.vmem [resolvable:$true] %s356
          %359 = dma.vmem_to_hbm [thread:$0]  %s357, 128, %s354, %s337
        $region48: #{tpu_custom_call.1} parent=31 // pred_fallthru
          _
        // Predicated region
        $region49: #{tpu_custom_call.1} parent=31 // pred_check
          %p360 = pneg %p166
        $region50: #{tpu_custom_call.1} parent=31 // pred_check_branch
          %362 = sbr.rel (%p360) target = $region52
        $region51: #{tpu_custom_call.1} parent=31 // pred_region
          %s364 = ssub.s32 32, 32
          %365 = vsyncadd %s342, %s364
          %s366 = sadd.s32 %s31, %s30
          %s367 = smul.addr %s366, 32
          %s368 = scalar_lea.hbm %s4, %s367
          %s370 = sshll.u32 %s345, 4
          %s371 = int_to_ptr.vmem [resolvable:$true] %s370
          %373 = dma.vmem_to_hbm [thread:$0]  %s371, 32, %s368, %s342
        $region52: #{tpu_custom_call.1} parent=31 // pred_fallthru
          _
      $region32: #{tpu_custom_call.1} parent=5 // pred_fallthru
        _
      %p374 = scmp.le.s32.totalorder 2, %s21
      // Predicated region
      $region53: #{tpu_custom_call.1} parent=5 // pred_check
        %p375 = pneg %p374
      $region54: #{tpu_custom_call.1} parent=5 // pred_check_branch
        %377 = sbr.rel (%p375) target = $region56
      $region55: #{tpu_custom_call.1} parent=5 // pred_region
        %s378 = ssub.s32 %s21, 2
        // Predicated region
        $region57: #{tpu_custom_call.1} parent=55 // pred_check
          %p379 = pneg %p144
        $region58: #{tpu_custom_call.1} parent=55 // pred_check_branch
          %381 = sbr.rel (%p379) target = $region60
        $region59: #{tpu_custom_call.1} parent=55 // pred_region
          %s382 = sand.u32 %s129, 1
          %s383 = scalar_lea.sflag [#allocation4], %s382
          %s384 = sand.u32 %s129, 1
          %s385 = smul.addr %s384, 8
          %s386 = scalar_lea.vmem [#allocation8], %s385
          %387 = dma.done %s383, 128
        $region60: #{tpu_custom_call.1} parent=55 // pred_fallthru
          _
        // Predicated region
        $region61: #{tpu_custom_call.1} parent=55 // pred_check
          %p388 = pneg %p172
        $region62: #{tpu_custom_call.1} parent=55 // pred_check_branch
          %390 = sbr.rel (%p388) target = $region64
        $region63: #{tpu_custom_call.1} parent=55 // pred_region
          %s391 = sand.u32 %s157, 1
          %s392 = scalar_lea.sflag [#allocation10], %s391
          %s393 = sand.u32 %s157, 1
          %s394 = smul.addr %s393, 2
          %s395 = scalar_lea.vmem [#allocation9], %s394
          %396 = dma.done %s392, 32
        $region64: #{tpu_custom_call.1} parent=55 // pred_fallthru
          _
      $region56: #{tpu_custom_call.1} parent=5 // pred_fallthru
        _
    $region6: #{tpu_custom_call.1} parent=1 // loop_footer
      %s25 = sadd.s32 1, %s21
    $region7: #{tpu_custom_call.1} parent=1 // loop_footer_branch
      %20 = sbr.rel target = $region3
    $region8: #{tpu_custom_call.1} parent=1 // loop_exit
      _
    %397 = vsyncpa [#allocation3], 1
    %s398 = scalar_lea.sflag [#allocation3], 1
    %399 = vsyncpa %s398, 1
    %400 = vsyncpa [#allocation6], 1
    %401 = vsyncpa [#allocation4], 1
    %s402 = scalar_lea.sflag [#allocation4], 1
    %403 = vsyncpa %s402, 1
    %404 = vsyncpa [#allocation10], 1
    %s405 = scalar_lea.sflag [#allocation10], 1
    %406 = vsyncpa %s405, 1

</llo_original>
